<compile_context>
chip_gen: v5e
topology: v5e:2x2
jax: 0.10.0
libtpu: 0.0.40
codegen_flags: <defaults>
</compile_context>

<pallas_src>
import functools
import math

import jax
import jax.numpy as jnp
from jax.experimental import pallas as pl
from jax.experimental.pallas import tpu as pltpu


def _round_up(a, b):
    return -(-a // b) * b


def _pick_block_rows(qh, wp, target=16):
    """Per-phase output rows per grid step.

    Single block => block shape equals full array dims (always legal);
    otherwise keep TQ*Wp a multiple of 8 (sublane tiling constraint).
    """
    if qh <= target:
        return qh
    step = 8 // math.gcd(wp, 8)
    nblocks = -(-qh // target)
    return _round_up(-(-qh // nblocks), step)


def _subpixel_kernel(x_ref, w_ref, b_ref, o_ref, *, Km, Kl, TQ, Wp):
    """One block of TQ phase-rows for one batch element.

    x_ref: (Hp*Wp, Cin)        row-major flattened zero-padded input
    w_ref: (Km, Kl, Cin, Pout) phase-folded, tap-flipped weights (Pout = s*s*Cout)
    b_ref: (1, Pout)           bias replicated across the s*s phases
    o_ref: (TQ*Wp, Pout)       TQ phase-rows x Wp cols (last Kl-1 cols are junk)
    """
    blk = pl.program_id(1)
    row0 = blk * TQ
    M, _ = o_ref.shape

    acc = jnp.zeros(o_ref.shape, jnp.float32)
    for m in range(Km):
        for l in range(Kl):
            start = (row0 + m) * Wp + l
            tap = x_ref[pl.ds(start, M), :]          # (M, Cin), native dtype
            acc = acc + jnp.dot(tap, w_ref[m, l],    # MXU, f32 accumulation
                                preferred_element_type=jnp.float32)
    acc = acc + b_ref[...].astype(jnp.float32)       # (1, Pout) broadcasts
    o_ref[...] = acc.astype(o_ref.dtype)


def upsample_conv_layer(x, w, b, stride, *, block_rows=16):
    """Forward of nn.ConvTranspose2d(Cin, Cout, K, stride, padding=0).

    x: (N, Cin, H, W);  w: (Cin, Cout, K, K);  b: (Cout,)
    returns (N, Cout, (H-1)*stride+K, (W-1)*stride+K)
    """
    N, Cin, H, W = x.shape
    Cin_w, Cout, K, K2 = w.shape
    assert K == K2 and Cin_w == Cin
    s = int(stride)
    H_out = (H - 1) * s + K
    W_out = (W - 1) * s + K

    # Pad K up to a multiple of s with zero taps so all s*s phases share the
    # same number of taps: Km = Kl = K_pad // s.
    K_pad = _round_up(K, s)
    Km = Kl = K_pad // s
    if K_pad != K:
        w = jnp.pad(w, ((0, 0), (0, 0), (0, K_pad - K), (0, K_pad - K)))

    Pout = s * s * Cout
    Qh = H + Km - 1            # per-phase output rows
    Qw = W + Kl - 1            # per-phase output cols (valid)
    Wp = W + 2 * (Kl - 1)      # padded input width == computed cols per row

    TQ = _pick_block_rows(Qh, Wp, block_rows)
    Qh_pad = _round_up(Qh, TQ)
    nb = Qh_pad // TQ

    # ---- plain-JAX glue ----------------------------------------------------
    # Phase-folded, tap-flipped weights:
    #   w_poly[m, l, ci, (rh*s+rw)*Cout+co] = w[ci, co, rh+s*(Km-1-m), rw+s*(Kl-1-l)]
    w_r = w.reshape(Cin, Cout, Km, s, Kl, s)[:, :, ::-1, :, ::-1, :]
    w_poly = jnp.transpose(w_r, (2, 4, 0, 3, 5, 1)).reshape(Km, Kl, Cin, Pout)
    b_poly = jnp.tile(b, s * s).reshape(1, Pout)

    # Zero-pad the ORIGINAL input (no zero-stuffing) and flatten (H, W) so each
    # kernel tap is one contiguous slice.  Extra bottom rows cover row-block
    # padding plus the (Kl-1)-element wrap of the last tap's slice.
    x_nhwc = jnp.transpose(x, (0, 2, 3, 1))
    pad_bottom = (Km - 1) + (Qh_pad - Qh) + 1
    x_p = jnp.pad(x_nhwc, ((0, 0), (Km - 1, pad_bottom), (Kl - 1, Kl - 1), (0, 0)))
    Hp = x_p.shape[1]                       # == Qh_pad + Km
    x_flat = x_p.reshape(N, Hp * Wp, Cin)

    kernel = functools.partial(_subpixel_kernel, Km=Km, Kl=Kl, TQ=TQ, Wp=Wp)

    itemsize = jnp.dtype(x.dtype).itemsize
    flops = 2 * N * nb * (TQ * Wp) * (Km * Kl * Cin) * Pout
    bytes_accessed = (x_flat.size * itemsize
                      + w_poly.size * jnp.dtype(w_poly.dtype).itemsize
                      + b_poly.size * jnp.dtype(b_poly.dtype).itemsize
                      + N * Qh_pad * Wp * Pout * itemsize)

    out_flat = pl.pallas_call(
        kernel,
        out_shape=jax.ShapeDtypeStruct((N, Qh_pad * Wp, Pout), x.dtype),
        grid=(N, nb),
        in_specs=[
            pl.BlockSpec((None, Hp * Wp, Cin), lambda n, bk: (n, 0, 0)),
            pl.BlockSpec((Km, Kl, Cin, Pout), lambda n, bk: (0, 0, 0, 0)),
            pl.BlockSpec((1, Pout), lambda n, bk: (0, 0)),
        ],
        out_specs=pl.BlockSpec((None, TQ * Wp, Pout), lambda n, bk: (n, bk, 0)),
        compiler_params=pltpu.CompilerParams(
            dimension_semantics=("parallel", "parallel")),
        cost_estimate=pl.CostEstimate(
            flops=flops, transcendentals=0, bytes_accessed=bytes_accessed),
    )(x_flat, w_poly, b_poly)

    # ---- pixel-shuffle the s*s phases back into NCHW -----------------------
    out = out_flat.reshape(N, Qh_pad, Wp, s, s, Cout)[:, :, :Qw]
    out = jnp.transpose(out, (0, 1, 3, 2, 4, 5)).reshape(N, Qh_pad * s, Qw * s, Cout)
    out = out[:, :H_out, :W_out, :]
    return jnp.transpose(out, (0, 3, 1, 2))


if __name__ == "__main__":
    key = jax.random.PRNGKey(0)
    kx, kwk, kbk = jax.random.split(key, 3)

    # UpsampleConvLayer(4, 8, kernel_size=4, stride=2) at a small spatial size.
    N, Cin, H, W = 2, 4, 16, 16
    Cout, K, stride = 8, 4, 2

    x = jax.random.normal(kx, (N, Cin, H, W), jnp.float32)
    w = jax.random.normal(kwk, (Cin, Cout, K, K), jnp.float32) * 0.1
    b = jax.random.normal(kbk, (Cout,), jnp.float32) * 0.1

    out = jax.block_until_ready(upsample_conv_layer(x, w, b, stride))

    # Pure-JAX reference of ConvTranspose2d semantics (scatter-add formulation).
    H_out = (H - 1) * stride + K
    W_out = (W - 1) * stride + K
    ref = jnp.zeros((N, Cout, H_out, W_out), jnp.float32)
    for kh in range(K):
        for kw_ in range(K):
            contrib = jnp.einsum('nchw,cd->ndhw', x, w[:, :, kh, kw_])
            ref = ref.at[:, :,
                         kh:kh + (H - 1) * stride + 1:stride,
                         kw_:kw_ + (W - 1) * stride + 1:stride].add(contrib)
    ref = ref + b[None, :, None, None]

    assert out.shape == (N, Cout, H_out, W_out), out.shape
    err = float(jnp.max(jnp.abs(out - ref)))
    assert jnp.allclose(out, ref, atol=1e-4, rtol=1e-4), err
    print("KERNEL_OK")
</pallas_src>

<mosaic_0001>
module attributes {stable_mosaic.version = 11 : i64} {
  func.func @_subpixel_kernel(%arg0: i32, %arg1: i32, %arg2: memref<1x468x4xf32, #tpu.memory_space<vmem>>, %arg3: memref<2x2x4x32xf32, #tpu.memory_space<vmem>>, %arg4: memref<1x32xf32, #tpu.memory_space<vmem>>, %arg5: memref<1x216x32xf32, #tpu.memory_space<vmem>>) attributes {dimension_semantics = [#tpu.dimension_semantics<parallel>, #tpu.dimension_semantics<parallel>], iteration_bounds = array<i64: 2, 2>, scalar_prefetch = 0 : i64, scratch_operands = 0 : i64, tpu.core_type = #tpu.core_type<tc>, window_params = [{transform_indices = @transform_0, window_bounds = array<i64: 1, 468, 4>}, {pipeline_mode = #tpu.pipeline_mode<synchronous>, transform_indices = @transform_1, window_bounds = array<i64: 2, 2, 4, 32>}, {pipeline_mode = #tpu.pipeline_mode<synchronous>, transform_indices = @transform_2, window_bounds = array<i64: 1, 32>}, {transform_indices = @transform_3, window_bounds = array<i64: 1, 216, 32>}]} {
    %c12_i32 = arith.constant 12 : i32
    %0 = arith.muli %arg1, %c12_i32 : i32
    %cst = arith.constant 0.000000e+00 : f32
    %1 = vector.broadcast %cst : f32 to vector<216x32xf32>
    %c0_i32 = arith.constant 0 : i32
    %2 = arith.addi %0, %c0_i32 : i32
    %c18_i32 = arith.constant 18 : i32
    %3 = arith.muli %2, %c18_i32 : i32
    %c0_i32_0 = arith.constant 0 : i32
    %4 = arith.addi %3, %c0_i32_0 : i32
    %c0 = arith.constant 0 : index
    %5 = arith.index_cast %4 : i32 to index
    %c0_1 = arith.constant 0 : index
    %6 = vector.load %arg2[%c0, %5, %c0_1] : memref<1x468x4xf32, #tpu.memory_space<vmem>>, vector<1x216x4xf32>
    %7 = vector.shape_cast %6 : vector<1x216x4xf32> to vector<216x4xf32>
    %c0_2 = arith.constant 0 : index
    %c0_3 = arith.constant 0 : index
    %c0_4 = arith.constant 0 : index
    %c0_5 = arith.constant 0 : index
    %8 = vector.load %arg3[%c0_2, %c0_3, %c0_4, %c0_5] : memref<2x2x4x32xf32, #tpu.memory_space<vmem>>, vector<1x1x4x32xf32>
    %9 = vector.shape_cast %8 : vector<1x1x4x32xf32> to vector<4x32xf32>
    %cst_6 = arith.constant dense<0.000000e+00> : vector<216x32xf32>
    %10 = tpu.matmul %7, %9, %cst_6 {dimension_numbers = #tpu.dot_dimension_numbers<[1], [0], [0], [1], [0, 0, 1, 1], [], []>} : vector<216x4xf32>, vector<4x32xf32>, vector<216x32xf32> -> vector<216x32xf32>
    %11 = arith.addf %1, %10 : vector<216x32xf32>
    %c0_i32_7 = arith.constant 0 : i32
    %12 = arith.addi %0, %c0_i32_7 : i32
    %c18_i32_8 = arith.constant 18 : i32
    %13 = arith.muli %12, %c18_i32_8 : i32
    %c1_i32 = arith.constant 1 : i32
    %14 = arith.addi %13, %c1_i32 : i32
    %c0_9 = arith.constant 0 : index
    %15 = arith.index_cast %14 : i32 to index
    %c0_10 = arith.constant 0 : index
    %16 = vector.load %arg2[%c0_9, %15, %c0_10] : memref<1x468x4xf32, #tpu.memory_space<vmem>>, vector<1x216x4xf32>
    %17 = vector.shape_cast %16 : vector<1x216x4xf32> to vector<216x4xf32>
    %c0_11 = arith.constant 0 : index
    %c1 = arith.constant 1 : index
    %c0_12 = arith.constant 0 : index
    %c0_13 = arith.constant 0 : index
    %18 = vector.load %arg3[%c0_11, %c1, %c0_12, %c0_13] : memref<2x2x4x32xf32, #tpu.memory_space<vmem>>, vector<1x1x4x32xf32>
    %19 = vector.shape_cast %18 : vector<1x1x4x32xf32> to vector<4x32xf32>
    %cst_14 = arith.constant dense<0.000000e+00> : vector<216x32xf32>
    %20 = tpu.matmul %17, %19, %cst_14 {dimension_numbers = #tpu.dot_dimension_numbers<[1], [0], [0], [1], [0, 0, 1, 1], [], []>} : vector<216x4xf32>, vector<4x32xf32>, vector<216x32xf32> -> vector<216x32xf32>
    %21 = arith.addf %11, %20 : vector<216x32xf32>
    %c1_i32_15 = arith.constant 1 : i32
    %22 = arith.addi %0, %c1_i32_15 : i32
    %c18_i32_16 = arith.constant 18 : i32
    %23 = arith.muli %22, %c18_i32_16 : i32
    %c0_i32_17 = arith.constant 0 : i32
    %24 = arith.addi %23, %c0_i32_17 : i32
    %c0_18 = arith.constant 0 : index
    %25 = arith.index_cast %24 : i32 to index
    %c0_19 = arith.constant 0 : index
    %26 = vector.load %arg2[%c0_18, %25, %c0_19] : memref<1x468x4xf32, #tpu.memory_space<vmem>>, vector<1x216x4xf32>
    %27 = vector.shape_cast %26 : vector<1x216x4xf32> to vector<216x4xf32>
    %c1_20 = arith.constant 1 : index
    %c0_21 = arith.constant 0 : index
    %c0_22 = arith.constant 0 : index
    %c0_23 = arith.constant 0 : index
    %28 = vector.load %arg3[%c1_20, %c0_21, %c0_22, %c0_23] : memref<2x2x4x32xf32, #tpu.memory_space<vmem>>, vector<1x1x4x32xf32>
    %29 = vector.shape_cast %28 : vector<1x1x4x32xf32> to vector<4x32xf32>
    %cst_24 = arith.constant dense<0.000000e+00> : vector<216x32xf32>
    %30 = tpu.matmul %27, %29, %cst_24 {dimension_numbers = #tpu.dot_dimension_numbers<[1], [0], [0], [1], [0, 0, 1, 1], [], []>} : vector<216x4xf32>, vector<4x32xf32>, vector<216x32xf32> -> vector<216x32xf32>
    %31 = arith.addf %21, %30 : vector<216x32xf32>
    %c1_i32_25 = arith.constant 1 : i32
    %32 = arith.addi %0, %c1_i32_25 : i32
    %c18_i32_26 = arith.constant 18 : i32
    %33 = arith.muli %32, %c18_i32_26 : i32
    %c1_i32_27 = arith.constant 1 : i32
    %34 = arith.addi %33, %c1_i32_27 : i32
    %c0_28 = arith.constant 0 : index
    %35 = arith.index_cast %34 : i32 to index
    %c0_29 = arith.constant 0 : index
    %36 = vector.load %arg2[%c0_28, %35, %c0_29] : memref<1x468x4xf32, #tpu.memory_space<vmem>>, vector<1x216x4xf32>
    %37 = vector.shape_cast %36 : vector<1x216x4xf32> to vector<216x4xf32>
    %c1_30 = arith.constant 1 : index
    %c1_31 = arith.constant 1 : index
    %c0_32 = arith.constant 0 : index
    %c0_33 = arith.constant 0 : index
    %38 = vector.load %arg3[%c1_30, %c1_31, %c0_32, %c0_33] : memref<2x2x4x32xf32, #tpu.memory_space<vmem>>, vector<1x1x4x32xf32>
    %39 = vector.shape_cast %38 : vector<1x1x4x32xf32> to vector<4x32xf32>
    %cst_34 = arith.constant dense<0.000000e+00> : vector<216x32xf32>
    %40 = tpu.matmul %37, %39, %cst_34 {dimension_numbers = #tpu.dot_dimension_numbers<[1], [0], [0], [1], [0, 0, 1, 1], [], []>} : vector<216x4xf32>, vector<4x32xf32>, vector<216x32xf32> -> vector<216x32xf32>
    %41 = arith.addf %31, %40 : vector<216x32xf32>
    %c0_35 = arith.constant 0 : index
    %c0_36 = arith.constant 0 : index
    %42 = vector.load %arg4[%c0_35, %c0_36] : memref<1x32xf32, #tpu.memory_space<vmem>>, vector<1x32xf32>
    %43 = vector.broadcast %42 : vector<1x32xf32> to vector<216x32xf32>
    %44 = arith.addf %41, %43 : vector<216x32xf32>
    %c0_37 = arith.constant 0 : index
    %c0_38 = arith.constant 0 : index
    %c0_39 = arith.constant 0 : index
    %45 = vector.load %arg5[%c0_37, %c0_38, %c0_39] : memref<1x216x32xf32, #tpu.memory_space<vmem>>, vector<1x216x32xf32>
    %46 = vector.shape_cast %45 : vector<1x216x32xf32> to vector<216x32xf32>
    %47 = vector.shape_cast %44 : vector<216x32xf32> to vector<1x216x32xf32>
    tpu.vector_store %arg5[%c0_37, %c0_38, %c0_39], %47 {strides = array<i32>} : memref<1x216x32xf32, #tpu.memory_space<vmem>>, vector<1x216x32xf32>,
    return
  }
  func.func @transform_0(%arg0: i32, %arg1: i32) -> (i32, i32, i32) {
    %c0_i32 = arith.constant 0 : i32
    %c0_i32_0 = arith.constant 0 : i32
    %c0_i32_1 = arith.constant 0 : i32
    return %arg0, %c0_i32, %c0_i32_0 : i32, i32, i32
  }
  func.func @transform_1(%arg0: i32, %arg1: i32) -> (i32, i32, i32, i32) {
    %c0_i32 = arith.constant 0 : i32
    %c0_i32_0 = arith.constant 0 : i32
    %c0_i32_1 = arith.constant 0 : i32
    %c0_i32_2 = arith.constant 0 : i32
    %c0_i32_3 = arith.constant 0 : i32
    return %c0_i32, %c0_i32_0, %c0_i32_1, %c0_i32_2 : i32, i32, i32, i32
  }
  func.func @transform_2(%arg0: i32, %arg1: i32) -> (i32, i32) {
    %c0_i32 = arith.constant 0 : i32
    %c0_i32_0 = arith.constant 0 : i32
    %c0_i32_1 = arith.constant 0 : i32
    return %c0_i32, %c0_i32_0 : i32, i32
  }
  func.func @transform_3(%arg0: i32, %arg1: i32) -> (i32, i32, i32) {
    %c0_i32 = arith.constant 0 : i32
    %c0_i32_0 = arith.constant 0 : i32
    return %arg0, %arg1, %c0_i32 : i32, i32, i32
  }
}

</mosaic_0001>

<llo_original>
// kernel: tpu_custom_call.1
$region0: #{tpu_custom_call.1}
  #allocation0 [shape = 'u32[]', space=smem, size = 0x4, offset = 0x4, fixed_abs, tag = 'smem constant byte address 0x4 - core index']
  #allocation1 [shape = 'u32[72,128]{1,0:T(1,128)}', space=vmem, size = 0x9000, scoped, tag = 'internal scratch']
  %s0 = inlined_call_operand.vmem [shape: f32[2,468,4], index: 0, kind: input, shape index: {}]
  %s1 = inlined_call_operand.vmem [shape: f32[2,2,4,32], index: 1, kind: input, shape index: {}]
  %s2 = inlined_call_operand.vmem [shape: f32[1,32], index: 2, kind: input, shape index: {}]
  %s3 = inlined_call_operand.vmem [shape: f32[2,432,32], index: 3, kind: output, shape index: {}]
  %s4 = sld [smem:[#allocation0]]
  $region45: #{tpu_custom_call.1} parent=0
    _
  %s6 = ssub.s32 1, %s4
  %s7 = scalar_select 0, %s6, %s4
  loop: start=0, step=1, limit=6
  $region2: #{tpu_custom_call.1} parent=0 // loop_pre_header
    _
  $region3: #{tpu_custom_call.1} parent=0 // loop_header
    %s9 = sphi 0, %s13
    %p10 = scmp.ge.s32.totalorder %s9, 6
    %s16 = sphi 0, %s28
    %s17 = sphi 0, %s24
    %s18 = sphi 0, %s16
    %s19 = sphi 0, %s17
    %s20 = sphi 0, %s18
    %s21 = sphi 0, %s19
    %s31 = sphi 0, %s33
    %s34 = sphi 0, %s31
    %s35 = sphi 0, %s34
    %s51 = sphi 0, %s35
    %s55 = sphi 0, %s55
    %s57 = sphi 0, %s55
    %s58 = sphi 0, %s57
    %s72 = sphi 0, %s58
    %s76 = sphi 0, %s76
    %s78 = sphi 0, %s76
    %s79 = sphi 0, %s78
    %s93 = sphi 0, %s79
    %s101 = sphi 0, %s103
    %s104 = sphi 0, %s101
    %s105 = sphi 0, %s104
    %s121 = sphi 0, %s105
  $region4: #{tpu_custom_call.1} parent=0 // loop_header_branch
    %12 = sbr.rel (%p10) target = $region8
  $region5: #{tpu_custom_call.1} parent=0 // loop_body
    %s14 = ssub.s32 %s9, 1
    %s15 = ssub.s32 %s9, 2
    %s22 = sadd.s32 1, %s17
    %p23 = scmp.ge.s32.totalorder %s22, 2
    %s24 = scalar_select %p23, 0, %s22
    %s25 = sadd.s32 1, %s16
    %s26 = scalar_select %p23, %s25, %s16
    %p27 = scmp.ge.s32.totalorder %s26, 2
    %s28 = scalar_select %p27, 0, %s26
    %s29 = ssub.s32 %s16, %s28
    %p30 = scmp.eq.s32.totalorder %s29, 0
    %s32 = sadd.s32 %s31, 1
    %s33 = scalar_select %p30, %s31, %s32
    %p36 = pneg %p30
    %p37 = scmp.eq.s32.totalorder %s9, 3
    %p38 = por %p36, %p37
    %p39 = scmp.ne.s32.totalorder %s31, %s34
    %p40 = scmp.eq.s32.totalorder %s9, 0
    %p41 = por %p39, %p40
    %p42 = scmp.ne.s32.totalorder %s31, %s34
    %p43 = scmp.eq.s32.totalorder %s14, 3
    %p44 = por %p42, %p43
    %p45 = scmp.ne.s32.totalorder %s34, %s35
    %p46 = scmp.eq.s32.totalorder %s14, 0
    %p47 = por %p45, %p46
    %p48 = scmp.ne.s32.totalorder %s34, %s35
    %p49 = scmp.eq.s32.totalorder %s15, 3
    %p50 = por %p48, %p49
    %p52 = scmp.ne.s32.totalorder %s35, %s51
    %p53 = scmp.eq.s32.totalorder %s15, 0
    %p54 = por %p52, %p53
    %s56 = sadd.s32 %s55, 1
    %p59 = scmp.eq.s32.totalorder %s9, 3
    %p60 = scmp.ne.s32.totalorder %s55, %s57
    %p61 = scmp.eq.s32.totalorder %s9, 0
    %p62 = por %p60, %p61
    %p63 = scmp.ne.s32.totalorder %s55, %s57
    %p64 = scmp.eq.s32.totalorder %s14, 3
    %p65 = por %p63, %p64
    %p66 = scmp.ne.s32.totalorder %s57, %s58
    %p67 = scmp.eq.s32.totalorder %s14, 0
    %p68 = por %p66, %p67
    %p69 = scmp.ne.s32.totalorder %s57, %s58
    %p70 = scmp.eq.s32.totalorder %s15, 3
    %p71 = por %p69, %p70
    %p73 = scmp.ne.s32.totalorder %s58, %s72
    %p74 = scmp.eq.s32.totalorder %s15, 0
    %p75 = por %p73, %p74
    %s77 = sadd.s32 %s76, 1
    %p80 = scmp.eq.s32.totalorder %s9, 3
    %p81 = scmp.ne.s32.totalorder %s76, %s78
    %p82 = scmp.eq.s32.totalorder %s9, 0
    %p83 = por %p81, %p82
    %p84 = scmp.ne.s32.totalorder %s76, %s78
    %p85 = scmp.eq.s32.totalorder %s14, 3
    %p86 = por %p84, %p85
    %p87 = scmp.ne.s32.totalorder %s78, %s79
    %p88 = scmp.eq.s32.totalorder %s14, 0
    %p89 = por %p87, %p88
    %p90 = scmp.ne.s32.totalorder %s78, %s79
    %p91 = scmp.eq.s32.totalorder %s15, 3
    %p92 = por %p90, %p91
    %p94 = scmp.ne.s32.totalorder %s79, %s93
    %p95 = scmp.eq.s32.totalorder %s15, 0
    %p96 = por %p94, %p95
    %s97 = ssub.s32 %s16, %s28
    %s98 = ssub.s32 %s17, %s24
    %s99 = sor.u32 %s97, %s98
    %p100 = scmp.eq.s32.totalorder %s99, 0
    %s102 = sadd.s32 %s101, 1
    %s103 = scalar_select %p100, %s101, %s102
    %p106 = pneg %p100
    %p107 = scmp.eq.s32.totalorder %s9, 3
    %p108 = por %p106, %p107
    %p109 = scmp.ne.s32.totalorder %s101, %s104
    %p110 = scmp.eq.s32.totalorder %s9, 0
    %p111 = por %p109, %p110
    %p112 = scmp.ne.s32.totalorder %s101, %s104
    %p113 = scmp.eq.s32.totalorder %s14, 3
    %p114 = por %p112, %p113
    %p115 = scmp.ne.s32.totalorder %s104, %s105
    %p116 = scmp.eq.s32.totalorder %s14, 0
    %p117 = por %p115, %p116
    %p118 = scmp.ne.s32.totalorder %s104, %s105
    %p119 = scmp.eq.s32.totalorder %s15, 3
    %p120 = por %p118, %p119
    %p122 = scmp.ne.s32.totalorder %s105, %s121
    %p123 = scmp.eq.s32.totalorder %s15, 0
    %p124 = por %p122, %p123
    %p125 = scmp.le.s32.totalorder 1, %s9
    %p126 = scmp.lt.s32.totalorder %s9, 5
    %p127 = pnand %p125, %p126
    %p128 = pneg %p127
    // Predicated region
    $region9: #{tpu_custom_call.1} parent=5 // pred_check
      _
    $region10: #{tpu_custom_call.1} parent=5 // pred_check_branch
      %130 = sbr.rel (%p127) target = $region12
    $region11: #{tpu_custom_call.1} parent=5 // pred_region
      %s131 = ssub.s32 %s9, 1
      // Predicated region
      $region13: #{tpu_custom_call.1} parent=11 // pred_check
        %p132 = pneg %p68
      $region14: #{tpu_custom_call.1} parent=11 // pred_check_branch
        %134 = sbr.rel (%p132) target = $region16
      $region15: #{tpu_custom_call.1} parent=11 // pred_region
        _
      $region16: #{tpu_custom_call.1} parent=11 // pred_fallthru
        _
      // Predicated region
      $region17: #{tpu_custom_call.1} parent=11 // pred_check
        %p135 = pneg %p89
      $region18: #{tpu_custom_call.1} parent=11 // pred_check_branch
        %137 = sbr.rel (%p135) target = $region20
      $region19: #{tpu_custom_call.1} parent=11 // pred_region
        _
      $region20: #{tpu_custom_call.1} parent=11 // pred_fallthru
        _
    $region12: #{tpu_custom_call.1} parent=5 // pred_fallthru
      _
    %p138 = scmp.lt.s32.totalorder %s9, 4
    // Predicated region
    $region21: #{tpu_custom_call.1} parent=5 // pred_check
      %p139 = pneg %p138
    $region22: #{tpu_custom_call.1} parent=5 // pred_check_branch
      %141 = sbr.rel (%p139) target = $region24
    $region23: #{tpu_custom_call.1} parent=5 // pred_region
      // Predicated region
      $region25: #{tpu_custom_call.1} parent=23 // pred_check
        %p142 = pneg %p41
      $region26: #{tpu_custom_call.1} parent=23 // pred_check_branch
        %144 = sbr.rel (%p142) target = $region28
      $region27: #{tpu_custom_call.1} parent=23 // pred_region
        %p145 = scmp.lt.s32.totalorder %s16, 1
        %s146 = scalar_select %p145, %s16, 1
        %s147 = smul.addr %s146, 59
        %s148 = smul.addr %s147, 8
        %s149 = scalar_lea.vmem %s0, %s148
      $region28: #{tpu_custom_call.1} parent=23 // pred_fallthru
        _
    $region24: #{tpu_custom_call.1} parent=5 // pred_fallthru
      _
    %p150 = scmp.le.s32.totalorder 1, %s9
    %p151 = scmp.lt.s32.totalorder %s9, 5
    %p152 = pnand %p150, %p151
    %p153 = pneg %p152
    // Predicated region
    $region29: #{tpu_custom_call.1} parent=5 // pred_check
      _
    $region30: #{tpu_custom_call.1} parent=5 // pred_check_branch
      %155 = sbr.rel (%p152) target = $region32
    $region31: #{tpu_custom_call.1} parent=5 // pred_region
      %s156 = ssub.s32 %s9, 1
      %p157 = scmp.lt.s32.totalorder %s18, 1
      %s158 = scalar_select %p157, %s18, 1
      %s159 = smul.addr %s158, 59
      %s160 = smul.addr %s159, 8
      %s161 = scalar_lea.vmem %s0, %s160
      %p162 = pneg %p47
      %p163 = pneg %p44
      %p164 = pneg %p68
      %p165 = pneg %p65
      %p166 = pneg %p89
      %p167 = pneg %p86
      %p168 = pneg %p117
      %p169 = pneg %p114
      %s170 = smul.u32 27, %s19
      %p171 = scmp.lt.s32.totalorder %s18, 1
      %s172 = scalar_select %p171, %s18, 1
      %p173 = scmp.lt.s32.totalorder %s170, 53
      %s174 = scalar_select %p173, %s170, 53
      %s175 = smul.addr %s172, 54
      %s176 = sadd.s32 %s174, %s175
      %s177 = smul.addr %s176, 8
      %s178 = scalar_lea.vmem %s3, %s177
      %p179 = scmp.lt.s32.totalorder %s18, 1
      %s180 = scalar_select %p179, %s18, 1
      %s181 = smul.addr %s180, 59
      %s182 = smul.addr %s181, 8
      %s183 = scalar_lea.vmem %s0, %s182
      %s184 = smul.u32 27, %s19
      %p185 = scmp.lt.s32.totalorder %s18, 1
      %s186 = scalar_select %p185, %s18, 1
      %p187 = scmp.lt.s32.totalorder %s184, 53
      %s188 = scalar_select %p187, %s184, 53
      %s189 = smul.addr %s186, 54
      %s190 = sadd.s32 %s188, %s189
      %s191 = smul.addr %s190, 8
      %s192 = scalar_lea.vmem %s3, %s191
      %s193 = smul.u32 27, %s19
      %s194 = smul.u32 %s19, 12
      %s195 = smul.u32 %s19, 216
      %s196 = scalar_lea.vmem %s183, %s195
      %v197 = vld [vmem:[%s196] sm:$0xff]
      %v198 = vld [vmem:[%s196 + $0x8] sm:$0xff]
      %v199 = vld [vmem:[%s196 + $0x10] sm:$0xff]
      %v200 = vld [vmem:[%s196 + $0x18] sm:$0xff]
      %v201 = vld [vmem:[%s196 + $0x20] sm:$0xff]
      %v202 = vld [vmem:[%s196 + $0x28] sm:$0xff]
      %v203 = vld [vmem:[%s196 + $0x30] sm:$0xff]
      %v204 = vld [vmem:[%s196 + $0x38] sm:$0xff]
      %v205 = vld [vmem:[%s196 + $0x40] sm:$0xff]
      %v206 = vld [vmem:[%s196 + $0x48] sm:$0xff]
      %v207 = vld [vmem:[%s196 + $0x50] sm:$0xff]
      %v208 = vld [vmem:[%s196 + $0x58] sm:$0xff]
      %v209 = vld [vmem:[%s196 + $0x60] sm:$0xff]
      %v210 = vld [vmem:[%s196 + $0x68] sm:$0xff]
      %v211 = vld [vmem:[%s196 + $0x70] sm:$0xff]
      %v212 = vld [vmem:[%s196 + $0x78] sm:$0xff]
      %v213 = vld [vmem:[%s196 + $0x80] sm:$0xff]
      %v214 = vld [vmem:[%s196 + $0x88] sm:$0xff]
      %v215 = vld [vmem:[%s196 + $0x90] sm:$0xff]
      %v216 = vld [vmem:[%s196 + $0x98] sm:$0xff]
      %v217 = vld [vmem:[%s196 + $0xa0] sm:$0xff]
      %v218 = vld [vmem:[%s196 + $0xa8] sm:$0xff]
      %v219 = vld [vmem:[%s196 + $0xb0] sm:$0xff]
      %v220 = vld [vmem:[%s196 + $0xb8] sm:$0xff]
      %v221 = vld [vmem:[%s196 + $0xc0] sm:$0xff]
      %v222 = vld [vmem:[%s196 + $0xc8] sm:$0xff]
      %v223 = vld [vmem:[%s196 + $0xd0] sm:$0xff]
      %v224 = vld [vmem:[%s1] sm:$0xf]
      %s225 = sadd.s32 %s195, 1
      %s226 = scalar_lea.vmem %s183, %s225
      %v227 = vld [vmem:[%s226] sm:$0xff]
      %v228 = vld [vmem:[%s226 + $0x8] sm:$0xff]
      %v229 = vld [vmem:[%s226 + $0x10] sm:$0xff]
      %v230 = vld [vmem:[%s226 + $0x18] sm:$0xff]
      %v231 = vld [vmem:[%s226 + $0x20] sm:$0xff]
      %v232 = vld [vmem:[%s226 + $0x28] sm:$0xff]
      %v233 = vld [vmem:[%s226 + $0x30] sm:$0xff]
      %v234 = vld [vmem:[%s226 + $0x38] sm:$0xff]
      %v235 = vld [vmem:[%s226 + $0x40] sm:$0xff]
      %v236 = vld [vmem:[%s226 + $0x48] sm:$0xff]
      %v237 = vld [vmem:[%s226 + $0x50] sm:$0xff]
      %v238 = vld [vmem:[%s226 + $0x58] sm:$0xff]
      %v239 = vld [vmem:[%s226 + $0x60] sm:$0xff]
      %v240 = vld [vmem:[%s226 + $0x68] sm:$0xff]
      %v241 = vld [vmem:[%s226 + $0x70] sm:$0xff]
      %v242 = vld [vmem:[%s226 + $0x78] sm:$0xff]
      %v243 = vld [vmem:[%s226 + $0x80] sm:$0xff]
      %v244 = vld [vmem:[%s226 + $0x88] sm:$0xff]
      %v245 = vld [vmem:[%s226 + $0x90] sm:$0xff]
      %v246 = vld [vmem:[%s226 + $0x98] sm:$0xff]
      %v247 = vld [vmem:[%s226 + $0xa0] sm:$0xff]
      %v248 = vld [vmem:[%s226 + $0xa8] sm:$0xff]
      %v249 = vld [vmem:[%s226 + $0xb0] sm:$0xff]
      %v250 = vld [vmem:[%s226 + $0xb8] sm:$0xff]
      %v251 = vld [vmem:[%s226 + $0xc0] sm:$0xff]
      %v252 = vld [vmem:[%s226 + $0xc8] sm:$0xff]
      %v253 = vld [vmem:[%s226 + $0xd0] sm:$0xff]
      %s254 = scalar_lea.vmem %s1, 4
      %v255 = vld [vmem:[%s254] sm:$0xf]
      %vm256 = vcmask 31744
      %v258 = vsel %vm256, %v227, 0
      %v261 = vsel %vm256, %v228, 0
      %v264 = vsel %vm256, %v229, 0
      %v267 = vsel %vm256, %v230, 0
      %v270 = vsel %vm256, %v231, 0
      %v273 = vsel %vm256, %v232, 0
      %v276 = vsel %vm256, %v233, 0
      %v279 = vsel %vm256, %v234, 0
      %v282 = vsel %vm256, %v235, 0
      %v285 = vsel %vm256, %v236, 0
      %v288 = vsel %vm256, %v237, 0
      %v291 = vsel %vm256, %v238, 0
      %v294 = vsel %vm256, %v239, 0
      %v297 = vsel %vm256, %v240, 0
      %v300 = vsel %vm256, %v241, 0
      %v303 = vsel %vm256, %v242, 0
      %v306 = vsel %vm256, %v243, 0
      %v309 = vsel %vm256, %v244, 0
      %v312 = vsel %vm256, %v245, 0
      %v315 = vsel %vm256, %v246, 0
      %v318 = vsel %vm256, %v247, 0
      %v321 = vsel %vm256, %v248, 0
      %v324 = vsel %vm256, %v249, 0
      %v327 = vsel %vm256, %v250, 0
      %v330 = vsel %vm256, %v251, 0
      %v333 = vsel %vm256, %v252, 0
      %v336 = vsel %vm256, %v253, 0
      %vm338 = vcmask 1043456
      %v340 = vsel %vm338, %v255, 0
      %342 = vmatpush.msra.mxu0 0.0
      %343 = vmatpush.msra.mxu0 0.0
      %344 = vmatpush.msra.mxu0 0.0
      %345 = vmatpush.msra.mxu0 0.0
      %346 = vmatpush.msra.mxu0 0.0
      %347 = vmatpush.msra.mxu0 0.0
      %348 = vmatpush.msra.mxu0 0.0
      %349 = vmatpush.msra.mxu0 0.0
      %350 = vmatpush.msra.mxu0 0.0
      %351 = vmatpush.msra.mxu0 0.0
      %352 = vmatpush.msra.mxu0 0.0
      %353 = vmatpush.msra.mxu0 0.0
      %354 = vmatpush.msra.mxu0 0.0
      %355 = vmatpush.msra.mxu0 0.0
      %356 = vmatpush.msra.mxu0 0.0
      %357 = vmatpush.msra.mxu0 %v340
      %358 = vmatmul.f32.gmra.mxu0 %v258
      %v359 = vpop.f32.mrf.mxu0
      %v360 = vadd.f32 0.0, %v359
      %361 = vmatmul.f32.gmra.mxu0 %v261
      %v362 = vpop.f32.mrf.mxu0
      %v363 = vadd.f32 0.0, %v362
      %364 = vmatmul.f32.gmra.mxu0 %v264
      %v365 = vpop.f32.mrf.mxu0
      %v366 = vadd.f32 0.0, %v365
      %367 = vmatmul.f32.gmra.mxu0 %v267
      %v368 = vpop.f32.mrf.mxu0
      %v369 = vadd.f32 0.0, %v368
      %370 = vmatmul.f32.gmra.mxu0 %v270
      %v371 = vpop.f32.mrf.mxu0
      %v372 = vadd.f32 0.0, %v371
      %373 = vmatmul.f32.gmra.mxu0 %v273
      %v374 = vpop.f32.mrf.mxu0
      %v375 = vadd.f32 0.0, %v374
      %376 = vmatmul.f32.gmra.mxu0 %v276
      %v377 = vpop.f32.mrf.mxu0
      %v378 = vadd.f32 0.0, %v377
      %379 = vmatmul.f32.gmra.mxu0 %v279
      %v380 = vpop.f32.mrf.mxu0
      %v381 = vadd.f32 0.0, %v380
      %382 = vmatmul.f32.gmra.mxu0 %v282
      %v383 = vpop.f32.mrf.mxu0
      %v384 = vadd.f32 0.0, %v383
      %385 = vmatmul.f32.gmra.mxu0 %v285
      %v386 = vpop.f32.mrf.mxu0
      %v387 = vadd.f32 0.0, %v386
      %388 = vmatmul.f32.gmra.mxu0 %v288
      %v389 = vpop.f32.mrf.mxu0
      %v390 = vadd.f32 0.0, %v389
      %391 = vmatmul.f32.gmra.mxu0 %v291
      %v392 = vpop.f32.mrf.mxu0
      %v393 = vadd.f32 0.0, %v392
      %394 = vmatmul.f32.gmra.mxu0 %v294
      %v395 = vpop.f32.mrf.mxu0
      %v396 = vadd.f32 0.0, %v395
      %397 = vmatmul.f32.gmra.mxu0 %v297
      %v398 = vpop.f32.mrf.mxu0
      %v399 = vadd.f32 0.0, %v398
      %400 = vmatmul.f32.gmra.mxu0 %v300
      %v401 = vpop.f32.mrf.mxu0
      %v402 = vadd.f32 0.0, %v401
      %403 = vmatmul.f32.gmra.mxu0 %v303
      %v404 = vpop.f32.mrf.mxu0
      %v405 = vadd.f32 0.0, %v404
      %406 = vmatmul.f32.gmra.mxu0 %v306
      %v407 = vpop.f32.mrf.mxu0
      %v408 = vadd.f32 0.0, %v407
      %409 = vmatmul.f32.gmra.mxu0 %v309
      %v410 = vpop.f32.mrf.mxu0
      %v411 = vadd.f32 0.0, %v410
      %412 = vmatmul.f32.gmra.mxu0 %v312
      %v413 = vpop.f32.mrf.mxu0
      %v414 = vadd.f32 0.0, %v413
      %415 = vmatmul.f32.gmra.mxu0 %v315
      %v416 = vpop.f32.mrf.mxu0
      %v417 = vadd.f32 0.0, %v416
      %418 = vmatmul.f32.gmra.mxu0 %v318
      %v419 = vpop.f32.mrf.mxu0
      %v420 = vadd.f32 0.0, %v419
      %421 = vmatmul.f32.gmra.mxu0 %v321
      %v422 = vpop.f32.mrf.mxu0
      %v423 = vadd.f32 0.0, %v422
      %424 = vmatmul.f32.gmra.mxu0 %v324
      %v425 = vpop.f32.mrf.mxu0
      %v426 = vadd.f32 0.0, %v425
      %427 = vmatmul.f32.gmra.mxu0 %v327
      %v428 = vpop.f32.mrf.mxu0
      %v429 = vadd.f32 0.0, %v428
      %430 = vmatmul.f32.gmra.mxu0 %v330
      %v431 = vpop.f32.mrf.mxu0
      %v432 = vadd.f32 0.0, %v431
      %433 = vmatmul.f32.gmra.mxu0 %v333
      %v434 = vpop.f32.mrf.mxu0
      %v435 = vadd.f32 0.0, %v434
      %436 = vmatmul.f32.gmra.mxu0 %v336
      %v437 = vpop.f32.mrf.mxu0
      %v438 = vadd.f32 0.0, %v437
      %439 = vdwg.mxu0
      %v441 = vsel %vm256, %v197, 0
      %v444 = vsel %vm256, %v198, 0
      %v447 = vsel %vm256, %v199, 0
      %v450 = vsel %vm256, %v200, 0
      %v453 = vsel %vm256, %v201, 0
      %v456 = vsel %vm256, %v202, 0
      %v459 = vsel %vm256, %v203, 0
      %v462 = vsel %vm256, %v204, 0
      %v465 = vsel %vm256, %v205, 0
      %v468 = vsel %vm256, %v206, 0
      %v471 = vsel %vm256, %v207, 0
      %v474 = vsel %vm256, %v208, 0
      %v477 = vsel %vm256, %v209, 0
      %v480 = vsel %vm256, %v210, 0
      %v483 = vsel %vm256, %v211, 0
      %v486 = vsel %vm256, %v212, 0
      %v489 = vsel %vm256, %v213, 0
      %v492 = vsel %vm256, %v214, 0
      %v495 = vsel %vm256, %v215, 0
      %v498 = vsel %vm256, %v216, 0
      %v501 = vsel %vm256, %v217, 0
      %v504 = vsel %vm256, %v218, 0
      %v507 = vsel %vm256, %v219, 0
      %v510 = vsel %vm256, %v220, 0
      %v513 = vsel %vm256, %v221, 0
      %v516 = vsel %vm256, %v222, 0
      %v519 = vsel %vm256, %v223, 0
      %v522 = vsel %vm338, %v224, 0
      %524 = vmatpush.msra.mxu0 0.0
      %525 = vmatpush.msra.mxu0 0.0
      %526 = vmatpush.msra.mxu0 0.0
      %527 = vmatpush.msra.mxu0 0.0
      %528 = vmatpush.msra.mxu0 0.0
      %529 = vmatpush.msra.mxu0 0.0
      %530 = vmatpush.msra.mxu0 0.0
      %531 = vmatpush.msra.mxu0 0.0
      %532 = vmatpush.msra.mxu0 0.0
      %533 = vmatpush.msra.mxu0 0.0
      %534 = vmatpush.msra.mxu0 0.0
      %535 = vmatpush.msra.mxu0 0.0
      %536 = vmatpush.msra.mxu0 0.0
      %537 = vmatpush.msra.mxu0 0.0
      %538 = vmatpush.msra.mxu0 0.0
      %539 = vmatpush.msra.mxu0 %v522
      %540 = vmatmul.f32.gmra.mxu0 %v441
      %v541 = vpop.f32.mrf.mxu0
      %v542 = vadd.f32 %v360, %v541
      %543 = vmatmul.f32.gmra.mxu0 %v444
      %v544 = vpop.f32.mrf.mxu0
      %v545 = vadd.f32 %v363, %v544
      %546 = vmatmul.f32.gmra.mxu0 %v447
      %v547 = vpop.f32.mrf.mxu0
      %v548 = vadd.f32 %v366, %v547
      %549 = vmatmul.f32.gmra.mxu0 %v450
      %v550 = vpop.f32.mrf.mxu0
      %v551 = vadd.f32 %v369, %v550
      %552 = vmatmul.f32.gmra.mxu0 %v453
      %v553 = vpop.f32.mrf.mxu0
      %v554 = vadd.f32 %v372, %v553
      %555 = vmatmul.f32.gmra.mxu0 %v456
      %v556 = vpop.f32.mrf.mxu0
      %v557 = vadd.f32 %v375, %v556
      %558 = vmatmul.f32.gmra.mxu0 %v459
      %v559 = vpop.f32.mrf.mxu0
      %v560 = vadd.f32 %v378, %v559
      %561 = vmatmul.f32.gmra.mxu0 %v462
      %v562 = vpop.f32.mrf.mxu0
      %v563 = vadd.f32 %v381, %v562
      %564 = vmatmul.f32.gmra.mxu0 %v465
      %v565 = vpop.f32.mrf.mxu0
      %v566 = vadd.f32 %v384, %v565
      %567 = vmatmul.f32.gmra.mxu0 %v468
      %v568 = vpop.f32.mrf.mxu0
      %v569 = vadd.f32 %v387, %v568
      %570 = vmatmul.f32.gmra.mxu0 %v471
      %v571 = vpop.f32.mrf.mxu0
      %v572 = vadd.f32 %v390, %v571
      %573 = vmatmul.f32.gmra.mxu0 %v474
      %v574 = vpop.f32.mrf.mxu0
      %v575 = vadd.f32 %v393, %v574
      %576 = vmatmul.f32.gmra.mxu0 %v477
      %v577 = vpop.f32.mrf.mxu0
      %v578 = vadd.f32 %v396, %v577
      %579 = vmatmul.f32.gmra.mxu0 %v480
      %v580 = vpop.f32.mrf.mxu0
      %v581 = vadd.f32 %v399, %v580
      %582 = vmatmul.f32.gmra.mxu0 %v483
      %v583 = vpop.f32.mrf.mxu0
      %v584 = vadd.f32 %v402, %v583
      %585 = vmatmul.f32.gmra.mxu0 %v486
      %v586 = vpop.f32.mrf.mxu0
      %v587 = vadd.f32 %v405, %v586
      %588 = vmatmul.f32.gmra.mxu0 %v489
      %v589 = vpop.f32.mrf.mxu0
      %v590 = vadd.f32 %v408, %v589
      %591 = vmatmul.f32.gmra.mxu0 %v492
      %v592 = vpop.f32.mrf.mxu0
      %v593 = vadd.f32 %v411, %v592
      %594 = vmatmul.f32.gmra.mxu0 %v495
      %v595 = vpop.f32.mrf.mxu0
      %v596 = vadd.f32 %v414, %v595
      %597 = vmatmul.f32.gmra.mxu0 %v498
      %v598 = vpop.f32.mrf.mxu0
      %v599 = vadd.f32 %v417, %v598
      %600 = vmatmul.f32.gmra.mxu0 %v501
      %v601 = vpop.f32.mrf.mxu0
      %v602 = vadd.f32 %v420, %v601
      %603 = vmatmul.f32.gmra.mxu0 %v504
      %v604 = vpop.f32.mrf.mxu0
      %v605 = vadd.f32 %v423, %v604
      %606 = vmatmul.f32.gmra.mxu0 %v507
      %v607 = vpop.f32.mrf.mxu0
      %v608 = vadd.f32 %v426, %v607
      %609 = vmatmul.f32.gmra.mxu0 %v510
      %v610 = vpop.f32.mrf.mxu0
      %v611 = vadd.f32 %v429, %v610
      %612 = vmatmul.f32.gmra.mxu0 %v513
      %v613 = vpop.f32.mrf.mxu0
      %v614 = vadd.f32 %v432, %v613
      %615 = vmatmul.f32.gmra.mxu0 %v516
      %v616 = vpop.f32.mrf.mxu0
      %v617 = vadd.f32 %v435, %v616
      %618 = vmatmul.f32.gmra.mxu0 %v519
      %v619 = vpop.f32.mrf.mxu0
      %v620 = vadd.f32 %v438, %v619
      %621 = vdwg.mxu0
      %s622 = sadd.s32 %s194, 1
      %s623 = smul.u32 %s622, 18
      %s624 = scalar_lea.vmem %s183, %s623
      %v625 = vld [vmem:[%s624] sm:$0xff]
      %v626 = vld [vmem:[%s624 + $0x8] sm:$0xff]
      %v627 = vld [vmem:[%s624 + $0x10] sm:$0xff]
      %v628 = vld [vmem:[%s624 + $0x18] sm:$0xff]
      %v629 = vld [vmem:[%s624 + $0x20] sm:$0xff]
      %v630 = vld [vmem:[%s624 + $0x28] sm:$0xff]
      %v631 = vld [vmem:[%s624 + $0x30] sm:$0xff]
      %v632 = vld [vmem:[%s624 + $0x38] sm:$0xff]
      %v633 = vld [vmem:[%s624 + $0x40] sm:$0xff]
      %v634 = vld [vmem:[%s624 + $0x48] sm:$0xff]
      %v635 = vld [vmem:[%s624 + $0x50] sm:$0xff]
      %v636 = vld [vmem:[%s624 + $0x58] sm:$0xff]
      %v637 = vld [vmem:[%s624 + $0x60] sm:$0xff]
      %v638 = vld [vmem:[%s624 + $0x68] sm:$0xff]
      %v639 = vld [vmem:[%s624 + $0x70] sm:$0xff]
      %v640 = vld [vmem:[%s624 + $0x78] sm:$0xff]
      %v641 = vld [vmem:[%s624 + $0x80] sm:$0xff]
      %v642 = vld [vmem:[%s624 + $0x88] sm:$0xff]
      %v643 = vld [vmem:[%s624 + $0x90] sm:$0xff]
      %v644 = vld [vmem:[%s624 + $0x98] sm:$0xff]
      %v645 = vld [vmem:[%s624 + $0xa0] sm:$0xff]
      %v646 = vld [vmem:[%s624 + $0xa8] sm:$0xff]
      %v647 = vld [vmem:[%s624 + $0xb0] sm:$0xff]
      %v648 = vld [vmem:[%s624 + $0xb8] sm:$0xff]
      %v649 = vld [vmem:[%s624 + $0xc0] sm:$0xff]
      %v650 = vld [vmem:[%s624 + $0xc8] sm:$0xff]
      %v651 = vld [vmem:[%s624 + $0xd0] sm:$0xff]
      %s652 = scalar_lea.vmem %s1, 8
      %v653 = vld [vmem:[%s652] sm:$0xf]
      %v655 = vsel %vm256, %v625, 0
      %v658 = vsel %vm256, %v626, 0
      %v661 = vsel %vm256, %v627, 0
      %v664 = vsel %vm256, %v628, 0
      %v667 = vsel %vm256, %v629, 0
      %v670 = vsel %vm256, %v630, 0
      %v673 = vsel %vm256, %v631, 0
      %v676 = vsel %vm256, %v632, 0
      %v679 = vsel %vm256, %v633, 0
      %v682 = vsel %vm256, %v634, 0
      %v685 = vsel %vm256, %v635, 0
      %v688 = vsel %vm256, %v636, 0
      %v691 = vsel %vm256, %v637, 0
      %v694 = vsel %vm256, %v638, 0
      %v697 = vsel %vm256, %v639, 0
      %v700 = vsel %vm256, %v640, 0
      %v703 = vsel %vm256, %v641, 0
      %v706 = vsel %vm256, %v642, 0
      %v709 = vsel %vm256, %v643, 0
      %v712 = vsel %vm256, %v644, 0
      %v715 = vsel %vm256, %v645, 0
      %v718 = vsel %vm256, %v646, 0
      %v721 = vsel %vm256, %v647, 0
      %v724 = vsel %vm256, %v648, 0
      %v727 = vsel %vm256, %v649, 0
      %v730 = vsel %vm256, %v650, 0
      %v733 = vsel %vm256, %v651, 0
      %v736 = vsel %vm338, %v653, 0
      %738 = vmatpush.msra.mxu0 0.0
      %739 = vmatpush.msra.mxu0 0.0
      %740 = vmatpush.msra.mxu0 0.0
      %741 = vmatpush.msra.mxu0 0.0
      %742 = vmatpush.msra.mxu0 0.0
      %743 = vmatpush.msra.mxu0 0.0
      %744 = vmatpush.msra.mxu0 0.0
      %745 = vmatpush.msra.mxu0 0.0
      %746 = vmatpush.msra.mxu0 0.0
      %747 = vmatpush.msra.mxu0 0.0
      %748 = vmatpush.msra.mxu0 0.0
      %749 = vmatpush.msra.mxu0 0.0
      %750 = vmatpush.msra.mxu0 0.0
      %751 = vmatpush.msra.mxu0 0.0
      %752 = vmatpush.msra.mxu0 0.0
      %753 = vmatpush.msra.mxu0 %v736
      %754 = vmatmul.f32.gmra.mxu0 %v655
      %v755 = vpop.f32.mrf.mxu0
      %v756 = vadd.f32 0.0, %v755
      %757 = vmatmul.f32.gmra.mxu0 %v658
      %v758 = vpop.f32.mrf.mxu0
      %v759 = vadd.f32 0.0, %v758
      %760 = vmatmul.f32.gmra.mxu0 %v661
      %v761 = vpop.f32.mrf.mxu0
      %v762 = vadd.f32 0.0, %v761
      %763 = vmatmul.f32.gmra.mxu0 %v664
      %v764 = vpop.f32.mrf.mxu0
      %v765 = vadd.f32 0.0, %v764
      %766 = vmatmul.f32.gmra.mxu0 %v667
      %v767 = vpop.f32.mrf.mxu0
      %v768 = vadd.f32 0.0, %v767
      %769 = vmatmul.f32.gmra.mxu0 %v670
      %v770 = vpop.f32.mrf.mxu0
      %v771 = vadd.f32 0.0, %v770
      %772 = vmatmul.f32.gmra.mxu0 %v673
      %v773 = vpop.f32.mrf.mxu0
      %v774 = vadd.f32 0.0, %v773
      %775 = vmatmul.f32.gmra.mxu0 %v676
      %v776 = vpop.f32.mrf.mxu0
      %v777 = vadd.f32 0.0, %v776
      %778 = vmatmul.f32.gmra.mxu0 %v679
      %v779 = vpop.f32.mrf.mxu0
      %v780 = vadd.f32 0.0, %v779
      %781 = vmatmul.f32.gmra.mxu0 %v682
      %v782 = vpop.f32.mrf.mxu0
      %v783 = vadd.f32 0.0, %v782
      %784 = vmatmul.f32.gmra.mxu0 %v685
      %v785 = vpop.f32.mrf.mxu0
      %v786 = vadd.f32 0.0, %v785
      %787 = vmatmul.f32.gmra.mxu0 %v688
      %v788 = vpop.f32.mrf.mxu0
      %v789 = vadd.f32 0.0, %v788
      %790 = vmatmul.f32.gmra.mxu0 %v691
      %v791 = vpop.f32.mrf.mxu0
      %v792 = vadd.f32 0.0, %v791
      %793 = vmatmul.f32.gmra.mxu0 %v694
      %v794 = vpop.f32.mrf.mxu0
      %v795 = vadd.f32 0.0, %v794
      %796 = vmatmul.f32.gmra.mxu0 %v697
      %v797 = vpop.f32.mrf.mxu0
      %v798 = vadd.f32 0.0, %v797
      %799 = vmatmul.f32.gmra.mxu0 %v700
      %v800 = vpop.f32.mrf.mxu0
      %v801 = vadd.f32 0.0, %v800
      %802 = vmatmul.f32.gmra.mxu0 %v703
      %v803 = vpop.f32.mrf.mxu0
      %v804 = vadd.f32 0.0, %v803
      %805 = vmatmul.f32.gmra.mxu0 %v706
      %v806 = vpop.f32.mrf.mxu0
      %v807 = vadd.f32 0.0, %v806
      %808 = vmatmul.f32.gmra.mxu0 %v709
      %v809 = vpop.f32.mrf.mxu0
      %v810 = vadd.f32 0.0, %v809
      %811 = vmatmul.f32.gmra.mxu0 %v712
      %v812 = vpop.f32.mrf.mxu0
      %v813 = vadd.f32 0.0, %v812
      %814 = vmatmul.f32.gmra.mxu0 %v715
      %v815 = vpop.f32.mrf.mxu0
      %v816 = vadd.f32 0.0, %v815
      %817 = vmatmul.f32.gmra.mxu0 %v718
      %v818 = vpop.f32.mrf.mxu0
      %v819 = vadd.f32 0.0, %v818
      %820 = vmatmul.f32.gmra.mxu0 %v721
      %v821 = vpop.f32.mrf.mxu0
      %v822 = vadd.f32 0.0, %v821
      %823 = vmatmul.f32.gmra.mxu0 %v724
      %v824 = vpop.f32.mrf.mxu0
      %v825 = vadd.f32 0.0, %v824
      %826 = vmatmul.f32.gmra.mxu0 %v727
      %v827 = vpop.f32.mrf.mxu0
      %v828 = vadd.f32 0.0, %v827
      %829 = vmatmul.f32.gmra.mxu0 %v730
      %v830 = vpop.f32.mrf.mxu0
      %v831 = vadd.f32 0.0, %v830
      %832 = vmatmul.f32.gmra.mxu0 %v733
      %v833 = vpop.f32.mrf.mxu0
      %v834 = vadd.f32 0.0, %v833
      %835 = vdwg.mxu0
      %v836 = vadd.f32 %v542, %v756
      %v837 = vadd.f32 %v545, %v759
      %v838 = vadd.f32 %v548, %v762
      %v839 = vadd.f32 %v551, %v765
      %v840 = vadd.f32 %v554, %v768
      %v841 = vadd.f32 %v557, %v771
      %v842 = vadd.f32 %v560, %v774
      %v843 = vadd.f32 %v563, %v777
      %v844 = vadd.f32 %v566, %v780
      %v845 = vadd.f32 %v569, %v783
      %v846 = vadd.f32 %v572, %v786
      %v847 = vadd.f32 %v575, %v789
      %v848 = vadd.f32 %v578, %v792
      %v849 = vadd.f32 %v581, %v795
      %v850 = vadd.f32 %v584, %v798
      %v851 = vadd.f32 %v587, %v801
      %v852 = vadd.f32 %v590, %v804
      %v853 = vadd.f32 %v593, %v807
      %v854 = vadd.f32 %v596, %v810
      %v855 = vadd.f32 %v599, %v813
      %v856 = vadd.f32 %v602, %v816
      %v857 = vadd.f32 %v605, %v819
      %v858 = vadd.f32 %v608, %v822
      %v859 = vadd.f32 %v611, %v825
      %v860 = vadd.f32 %v614, %v828
      %v861 = vadd.f32 %v617, %v831
      %v862 = vadd.f32 %v620, %v834
      %s863 = sadd.s32 %s623, 1
      %s864 = scalar_lea.vmem %s183, %s863
      %v865 = vld [vmem:[%s864] sm:$0xff]
      %v866 = vld [vmem:[%s864 + $0x8] sm:$0xff]
      %v867 = vld [vmem:[%s864 + $0x10] sm:$0xff]
      %v868 = vld [vmem:[%s864 + $0x18] sm:$0xff]
      %v869 = vld [vmem:[%s864 + $0x20] sm:$0xff]
      %v870 = vld [vmem:[%s864 + $0x28] sm:$0xff]
      %v871 = vld [vmem:[%s864 + $0x30] sm:$0xff]
      %v872 = vld [vmem:[%s864 + $0x38] sm:$0xff]
      %v873 = vld [vmem:[%s864 + $0x40] sm:$0xff]
      %v874 = vld [vmem:[%s864 + $0x48] sm:$0xff]
      %v875 = vld [vmem:[%s864 + $0x50] sm:$0xff]
      %v876 = vld [vmem:[%s864 + $0x58] sm:$0xff]
      %v877 = vld [vmem:[%s864 + $0x60] sm:$0xff]
      %v878 = vld [vmem:[%s864 + $0x68] sm:$0xff]
      %v879 = vld [vmem:[%s864 + $0x70] sm:$0xff]
      %v880 = vld [vmem:[%s864 + $0x78] sm:$0xff]
      %v881 = vld [vmem:[%s864 + $0x80] sm:$0xff]
      %v882 = vld [vmem:[%s864 + $0x88] sm:$0xff]
      %v883 = vld [vmem:[%s864 + $0x90] sm:$0xff]
      %v884 = vld [vmem:[%s864 + $0x98] sm:$0xff]
      %v885 = vld [vmem:[%s864 + $0xa0] sm:$0xff]
      %v886 = vld [vmem:[%s864 + $0xa8] sm:$0xff]
      %v887 = vld [vmem:[%s864 + $0xb0] sm:$0xff]
      %v888 = vld [vmem:[%s864 + $0xb8] sm:$0xff]
      %v889 = vld [vmem:[%s864 + $0xc0] sm:$0xff]
      %v890 = vld [vmem:[%s864 + $0xc8] sm:$0xff]
      %v891 = vld [vmem:[%s864 + $0xd0] sm:$0xff]
      %s892 = scalar_lea.vmem %s1, 12
      %v893 = vld [vmem:[%s892] sm:$0xf]
      %v895 = vsel %vm256, %v865, 0
      %v898 = vsel %vm256, %v866, 0
      %v901 = vsel %vm256, %v867, 0
      %v904 = vsel %vm256, %v868, 0
      %v907 = vsel %vm256, %v869, 0
      %v910 = vsel %vm256, %v870, 0
      %v913 = vsel %vm256, %v871, 0
      %v916 = vsel %vm256, %v872, 0
      %v919 = vsel %vm256, %v873, 0
      %v922 = vsel %vm256, %v874, 0
      %v925 = vsel %vm256, %v875, 0
      %v928 = vsel %vm256, %v876, 0
      %v931 = vsel %vm256, %v877, 0
      %v934 = vsel %vm256, %v878, 0
      %v937 = vsel %vm256, %v879, 0
      %v940 = vsel %vm256, %v880, 0
      %v943 = vsel %vm256, %v881, 0
      %v946 = vsel %vm256, %v882, 0
      %v949 = vsel %vm256, %v883, 0
      %v952 = vsel %vm256, %v884, 0
      %v955 = vsel %vm256, %v885, 0
      %v958 = vsel %vm256, %v886, 0
      %v961 = vsel %vm256, %v887, 0
      %v964 = vsel %vm256, %v888, 0
      %v967 = vsel %vm256, %v889, 0
      %v970 = vsel %vm256, %v890, 0
      %v973 = vsel %vm256, %v891, 0
      %v976 = vsel %vm338, %v893, 0
      %978 = vmatpush.msra.mxu0 0.0
      %979 = vmatpush.msra.mxu0 0.0
      %980 = vmatpush.msra.mxu0 0.0
      %981 = vmatpush.msra.mxu0 0.0
      %982 = vmatpush.msra.mxu0 0.0
      %983 = vmatpush.msra.mxu0 0.0
      %984 = vmatpush.msra.mxu0 0.0
      %985 = vmatpush.msra.mxu0 0.0
      %986 = vmatpush.msra.mxu0 0.0
      %987 = vmatpush.msra.mxu0 0.0
      %988 = vmatpush.msra.mxu0 0.0
      %989 = vmatpush.msra.mxu0 0.0
      %990 = vmatpush.msra.mxu0 0.0
      %991 = vmatpush.msra.mxu0 0.0
      %992 = vmatpush.msra.mxu0 0.0
      %993 = vmatpush.msra.mxu0 %v976
      %994 = vmatmul.f32.gmra.mxu0 %v895
      %v995 = vpop.f32.mrf.mxu0
      %v996 = vadd.f32 0.0, %v995
      %997 = vmatmul.f32.gmra.mxu0 %v898
      %v998 = vpop.f32.mrf.mxu0
      %v999 = vadd.f32 0.0, %v998
      %1000 = vmatmul.f32.gmra.mxu0 %v901
      %v1001 = vpop.f32.mrf.mxu0
      %v1002 = vadd.f32 0.0, %v1001
      %1003 = vmatmul.f32.gmra.mxu0 %v904
      %v1004 = vpop.f32.mrf.mxu0
      %v1005 = vadd.f32 0.0, %v1004
      %1006 = vmatmul.f32.gmra.mxu0 %v907
      %v1007 = vpop.f32.mrf.mxu0
      %v1008 = vadd.f32 0.0, %v1007
      %1009 = vmatmul.f32.gmra.mxu0 %v910
      %v1010 = vpop.f32.mrf.mxu0
      %v1011 = vadd.f32 0.0, %v1010
      %1012 = vmatmul.f32.gmra.mxu0 %v913
      %v1013 = vpop.f32.mrf.mxu0
      %v1014 = vadd.f32 0.0, %v1013
      %1015 = vmatmul.f32.gmra.mxu0 %v916
      %v1016 = vpop.f32.mrf.mxu0
      %v1017 = vadd.f32 0.0, %v1016
      %1018 = vmatmul.f32.gmra.mxu0 %v919
      %v1019 = vpop.f32.mrf.mxu0
      %v1020 = vadd.f32 0.0, %v1019
      %1021 = vmatmul.f32.gmra.mxu0 %v922
      %v1022 = vpop.f32.mrf.mxu0
      %v1023 = vadd.f32 0.0, %v1022
      %1024 = vmatmul.f32.gmra.mxu0 %v925
      %v1025 = vpop.f32.mrf.mxu0
      %v1026 = vadd.f32 0.0, %v1025
      %1027 = vmatmul.f32.gmra.mxu0 %v928
      %v1028 = vpop.f32.mrf.mxu0
      %v1029 = vadd.f32 0.0, %v1028
      %1030 = vmatmul.f32.gmra.mxu0 %v931
      %v1031 = vpop.f32.mrf.mxu0
      %v1032 = vadd.f32 0.0, %v1031
      %1033 = vmatmul.f32.gmra.mxu0 %v934
      %v1034 = vpop.f32.mrf.mxu0
      %v1035 = vadd.f32 0.0, %v1034
      %1036 = vmatmul.f32.gmra.mxu0 %v937
      %v1037 = vpop.f32.mrf.mxu0
      %v1038 = vadd.f32 0.0, %v1037
      %1039 = vmatmul.f32.gmra.mxu0 %v940
      %v1040 = vpop.f32.mrf.mxu0
      %v1041 = vadd.f32 0.0, %v1040
      %1042 = vmatmul.f32.gmra.mxu0 %v943
      %v1043 = vpop.f32.mrf.mxu0
      %v1044 = vadd.f32 0.0, %v1043
      %1045 = vmatmul.f32.gmra.mxu0 %v946
      %v1046 = vpop.f32.mrf.mxu0
      %v1047 = vadd.f32 0.0, %v1046
      %1048 = vmatmul.f32.gmra.mxu0 %v949
      %v1049 = vpop.f32.mrf.mxu0
      %v1050 = vadd.f32 0.0, %v1049
      %1051 = vmatmul.f32.gmra.mxu0 %v952
      %v1052 = vpop.f32.mrf.mxu0
      %v1053 = vadd.f32 0.0, %v1052
      %1054 = vmatmul.f32.gmra.mxu0 %v955
      %v1055 = vpop.f32.mrf.mxu0
      %v1056 = vadd.f32 0.0, %v1055
      %1057 = vmatmul.f32.gmra.mxu0 %v958
      %v1058 = vpop.f32.mrf.mxu0
      %v1059 = vadd.f32 0.0, %v1058
      %1060 = vmatmul.f32.gmra.mxu0 %v961
      %v1061 = vpop.f32.mrf.mxu0
      %v1062 = vadd.f32 0.0, %v1061
      %1063 = vmatmul.f32.gmra.mxu0 %v964
      %v1064 = vpop.f32.mrf.mxu0
      %v1065 = vadd.f32 0.0, %v1064
      %1066 = vmatmul.f32.gmra.mxu0 %v967
      %v1067 = vpop.f32.mrf.mxu0
      %v1068 = vadd.f32 0.0, %v1067
      %1069 = vmatmul.f32.gmra.mxu0 %v970
      %v1070 = vpop.f32.mrf.mxu0
      %v1071 = vadd.f32 0.0, %v1070
      %1072 = vmatmul.f32.gmra.mxu0 %v973
      %v1073 = vpop.f32.mrf.mxu0
      %v1074 = vadd.f32 0.0, %v1073
      %1075 = vdwg.mxu0
      %v1076 = vadd.f32 %v836, %v996
      %v1077 = vadd.f32 %v837, %v999
      %v1078 = vadd.f32 %v838, %v1002
      %v1079 = vadd.f32 %v839, %v1005
      %v1080 = vadd.f32 %v840, %v1008
      %v1081 = vadd.f32 %v841, %v1011
      %v1082 = vadd.f32 %v842, %v1014
      %v1083 = vadd.f32 %v843, %v1017
      %v1084 = vadd.f32 %v844, %v1020
      %v1085 = vadd.f32 %v845, %v1023
      %v1086 = vadd.f32 %v846, %v1026
      %v1087 = vadd.f32 %v847, %v1029
      %v1088 = vadd.f32 %v848, %v1032
      %v1089 = vadd.f32 %v849, %v1035
      %v1090 = vadd.f32 %v850, %v1038
      %v1091 = vadd.f32 %v851, %v1041
      %v1092 = vadd.f32 %v852, %v1044
      %v1093 = vadd.f32 %v853, %v1047
      %v1094 = vadd.f32 %v854, %v1050
      %v1095 = vadd.f32 %v855, %v1053
      %v1096 = vadd.f32 %v856, %v1056
      %v1097 = vadd.f32 %v857, %v1059
      %v1098 = vadd.f32 %v858, %v1062
      %v1099 = vadd.f32 %v859, %v1065
      %v1100 = vadd.f32 %v860, %v1068
      %v1101 = vadd.f32 %v861, %v1071
      %v1102 = vadd.f32 %v862, %v1074
      %v1103 = vld [vmem:[%s2] sm:$0x1]
      %v1105 = vperm.slane %v1103, 0
      %v1107 = vadd.f32 %v1076, %v1105
      %v1108 = vadd.f32 %v1077, %v1105
      %v1109 = vadd.f32 %v1078, %v1105
      %v1110 = vadd.f32 %v1079, %v1105
      %v1111 = vadd.f32 %v1080, %v1105
      %v1112 = vadd.f32 %v1081, %v1105
      %v1113 = vadd.f32 %v1082, %v1105
      %v1114 = vadd.f32 %v1083, %v1105
      %v1115 = vadd.f32 %v1084, %v1105
      %v1116 = vadd.f32 %v1085, %v1105
      %v1117 = vadd.f32 %v1086, %v1105
      %v1118 = vadd.f32 %v1087, %v1105
      %v1119 = vadd.f32 %v1088, %v1105
      %v1120 = vadd.f32 %v1089, %v1105
      %v1121 = vadd.f32 %v1090, %v1105
      %v1122 = vadd.f32 %v1091, %v1105
      %v1123 = vadd.f32 %v1092, %v1105
      %v1124 = vadd.f32 %v1093, %v1105
      %v1125 = vadd.f32 %v1094, %v1105
      %v1126 = vadd.f32 %v1095, %v1105
      %v1127 = vadd.f32 %v1096, %v1105
      %v1128 = vadd.f32 %v1097, %v1105
      %v1129 = vadd.f32 %v1098, %v1105
      %v1130 = vadd.f32 %v1099, %v1105
      %v1131 = vadd.f32 %v1100, %v1105
      %v1132 = vadd.f32 %v1101, %v1105
      %v1133 = vadd.f32 %v1102, %v1105
      %vm1134 = vcmask 261120
      %1135 = vst.msk [vmem:[%s192] sm:$0xff] %vm1134, %v1107
      %1136 = vst.msk [vmem:[%s192 + $0x8] sm:$0xff] %vm1134, %v1108
      %1137 = vst.msk [vmem:[%s192 + $0x10] sm:$0xff] %vm1134, %v1109
      %1138 = vst.msk [vmem:[%s192 + $0x18] sm:$0xff] %vm1134, %v1110
      %1139 = vst.msk [vmem:[%s192 + $0x20] sm:$0xff] %vm1134, %v1111
      %1140 = vst.msk [vmem:[%s192 + $0x28] sm:$0xff] %vm1134, %v1112
      %1141 = vst.msk [vmem:[%s192 + $0x30] sm:$0xff] %vm1134, %v1113
      %1142 = vst.msk [vmem:[%s192 + $0x38] sm:$0xff] %vm1134, %v1114
      %1143 = vst.msk [vmem:[%s192 + $0x40] sm:$0xff] %vm1134, %v1115
      %1144 = vst.msk [vmem:[%s192 + $0x48] sm:$0xff] %vm1134, %v1116
      %1145 = vst.msk [vmem:[%s192 + $0x50] sm:$0xff] %vm1134, %v1117
      %1146 = vst.msk [vmem:[%s192 + $0x58] sm:$0xff] %vm1134, %v1118
      %1147 = vst.msk [vmem:[%s192 + $0x60] sm:$0xff] %vm1134, %v1119
      %1148 = vst.msk [vmem:[%s192 + $0x68] sm:$0xff] %vm1134, %v1120
      %1149 = vst.msk [vmem:[%s192 + $0x70] sm:$0xff] %vm1134, %v1121
      %1150 = vst.msk [vmem:[%s192 + $0x78] sm:$0xff] %vm1134, %v1122
      %1151 = vst.msk [vmem:[%s192 + $0x80] sm:$0xff] %vm1134, %v1123
      %1152 = vst.msk [vmem:[%s192 + $0x88] sm:$0xff] %vm1134, %v1124
      %1153 = vst.msk [vmem:[%s192 + $0x90] sm:$0xff] %vm1134, %v1125
      %1154 = vst.msk [vmem:[%s192 + $0x98] sm:$0xff] %vm1134, %v1126
      %1155 = vst.msk [vmem:[%s192 + $0xa0] sm:$0xff] %vm1134, %v1127
      %1156 = vst.msk [vmem:[%s192 + $0xa8] sm:$0xff] %vm1134, %v1128
      %1157 = vst.msk [vmem:[%s192 + $0xb0] sm:$0xff] %vm1134, %v1129
      %1158 = vst.msk [vmem:[%s192 + $0xb8] sm:$0xff] %vm1134, %v1130
      %1159 = vst.msk [vmem:[%s192 + $0xc0] sm:$0xff] %vm1134, %v1131
      %1160 = vst.msk [vmem:[%s192 + $0xc8] sm:$0xff] %vm1134, %v1132
      %1161 = vst.msk [vmem:[%s192 + $0xd0] sm:$0xff] %vm1134, %v1133
      %s1162 = smul.u32 27, %s19
      %p1163 = scmp.lt.s32.totalorder %s18, 1
      %s1164 = scalar_select %p1163, %s18, 1
      %p1165 = scmp.lt.s32.totalorder %s1162, 53
      %s1166 = scalar_select %p1165, %s1162, 53
      %s1167 = smul.addr %s1164, 54
      %s1168 = sadd.s32 %s1166, %s1167
      %s1169 = smul.addr %s1168, 8
      %s1170 = scalar_lea.vmem %s3, %s1169
      // Predicated region
      $region33: #{tpu_custom_call.1} parent=31 // pred_check
        %p1171 = pneg %p114
      $region34: #{tpu_custom_call.1} parent=31 // pred_check_branch
        %1173 = sbr.rel (%p1171) target = $region36
      $region35: #{tpu_custom_call.1} parent=31 // pred_region
        %s1174 = smul.u32 27, %s19
      $region36: #{tpu_custom_call.1} parent=31 // pred_fallthru
        _
    $region32: #{tpu_custom_call.1} parent=5 // pred_fallthru
      _
    %p1175 = scmp.le.s32.totalorder 2, %s9
    // Predicated region
    $region37: #{tpu_custom_call.1} parent=5 // pred_check
      %p1176 = pneg %p1175
    $region38: #{tpu_custom_call.1} parent=5 // pred_check_branch
      %1178 = sbr.rel (%p1176) target = $region40
    $region39: #{tpu_custom_call.1} parent=5 // pred_region
      %s1179 = ssub.s32 %s9, 2
      // Predicated region
      $region41: #{tpu_custom_call.1} parent=39 // pred_check
        %p1180 = pneg %p120
      $region42: #{tpu_custom_call.1} parent=39 // pred_check_branch
        %1182 = sbr.rel (%p1180) target = $region44
      $region43: #{tpu_custom_call.1} parent=39 // pred_region
        %s1183 = smul.u32 27, %s21
        %p1184 = scmp.lt.s32.totalorder %s20, 1
        %s1185 = scalar_select %p1184, %s20, 1
        %p1186 = scmp.lt.s32.totalorder %s1183, 53
        %s1187 = scalar_select %p1186, %s1183, 53
        %s1188 = smul.addr %s1185, 54
        %s1189 = sadd.s32 %s1187, %s1188
        %s1190 = smul.addr %s1189, 8
        %s1191 = scalar_lea.vmem %s3, %s1190
      $region44: #{tpu_custom_call.1} parent=39 // pred_fallthru
        _
    $region40: #{tpu_custom_call.1} parent=5 // pred_fallthru
      _
  $region6: #{tpu_custom_call.1} parent=0 // loop_footer
    %s13 = sadd.s32 1, %s9
  $region7: #{tpu_custom_call.1} parent=0 // loop_footer_branch
    %8 = sbr.rel target = $region3
  $region8: #{tpu_custom_call.1} parent=0 // loop_exit
    _

</llo_original>
